<compile_context>
chip_gen: v5e
topology: v5e:2x2
jax: 0.10.0
libtpu: 0.0.40
codegen_flags: <defaults>
</compile_context>

<pallas_src>
import jax
import jax.numpy as jnp
import numpy as np
from jax.experimental import pallas as pl
from jax.experimental.pallas import tpu as pltpu

BN_EPS = 1e-5  # PyTorch BatchNorm1d default


# ---------------------------------------------------------------------------
# Fused kernel: Linear1 -> BN1 -> ReLU -> Linear2 -> BN2 -> +x -> ReLU
# ---------------------------------------------------------------------------
def _residual_block_kernel(x_ref, w1_ref, b1_ref, g1_ref, be1_ref,
                           w2_ref, b2_ref, g2_ref, be2_ref, o_ref):
    x = x_ref[...].astype(jnp.float32)

    # ---- Linear1: x @ W1 + b1   (W1 stored as (in, out); MXU, f32 accum) ----
    h = jnp.dot(x, w1_ref[...].astype(jnp.float32),
                preferred_element_type=jnp.float32) + b1_ref[...]

    # ---- BatchNorm1d #1 (batch statistics, biased variance) ----------------
    mu = jnp.mean(h, axis=0, keepdims=True)
    d = h - mu
    var = jnp.mean(d * d, axis=0, keepdims=True)
    h = g1_ref[...] * d * jax.lax.rsqrt(var + BN_EPS) + be1_ref[...]

    # ---- ReLU ----------------------------------------------------------------
    h = jnp.maximum(h, 0.0)

    # ---- Linear2 -------------------------------------------------------------
    h = jnp.dot(h, w2_ref[...].astype(jnp.float32),
                preferred_element_type=jnp.float32) + b2_ref[...]

    # ---- BatchNorm1d #2 ------------------------------------------------------
    mu2 = jnp.mean(h, axis=0, keepdims=True)
    d2 = h - mu2
    var2 = jnp.mean(d2 * d2, axis=0, keepdims=True)
    h = g2_ref[...] * d2 * jax.lax.rsqrt(var2 + BN_EPS) + be2_ref[...]

    # ---- residual add + final ReLU -------------------------------------------
    o_ref[...] = jnp.maximum(h + x, 0.0).astype(o_ref.dtype)


# ---------------------------------------------------------------------------
# Wrapper: single fused pallas_call, full-array blocks (everything fits VMEM;
# batch-stat BN couples the whole batch so the batch axis is not tiled).
# ---------------------------------------------------------------------------
def residual_block(x, params):
    B, C = x.shape
    w1, b1, g1, be1 = params["w1"], params["b1"], params["gamma1"], params["beta1"]
    w2, b2, g2, be2 = params["w2"], params["b2"], params["gamma2"], params["beta2"]

    mat_spec = pl.BlockSpec((C, C), lambda i: (0, 0))
    vec_spec = pl.BlockSpec((1, C), lambda i: (0, 0))
    act_spec = pl.BlockSpec((B, C), lambda i: (0, 0))

    out = pl.pallas_call(
        _residual_block_kernel,
        grid=(1,),
        in_specs=[act_spec,             # x
                  mat_spec, vec_spec, vec_spec, vec_spec,   # W1, b1, gamma1, beta1
                  mat_spec, vec_spec, vec_spec, vec_spec],  # W2, b2, gamma2, beta2
        out_specs=act_spec,
        out_shape=jax.ShapeDtypeStruct((B, C), x.dtype),
        compiler_params=pltpu.CompilerParams(
            dimension_semantics=("arbitrary",)),
    )(x, w1, b1, g1, be1, w2, b2, g2, be2)
    return out


# ---------------------------------------------------------------------------
# Pure-JAX reference (mirrors the PyTorch forward in training mode)
# ---------------------------------------------------------------------------
def residual_block_reference(x, params):
    def bn(h, gamma, beta):
        mu = jnp.mean(h, axis=0, keepdims=True)
        var = jnp.mean((h - mu) ** 2, axis=0, keepdims=True)
        return gamma * (h - mu) / jnp.sqrt(var + BN_EPS) + beta

    h = x @ params["w1"] + params["b1"]
    h = jnp.maximum(bn(h, params["gamma1"], params["beta1"]), 0.0)
    h = h @ params["w2"] + params["b2"]
    h = bn(h, params["gamma2"], params["beta2"])
    return jnp.maximum(h + x, 0.0)


if __name__ == "__main__":
    key = jax.random.PRNGKey(0)
    kx, kw1, kb1, kw2, kb2, kg1, kbe1, kg2, kbe2 = jax.random.split(key, 9)

    # Small shapes: batch=8, channels=128 (i_channel == o_channel, required by
    # the residual add). Lane-dense last dim keeps stores unmasked on TPU.
    B, C = 8, 128
    x = jax.random.normal(kx, (B, C), dtype=jnp.float32)

    # PyTorch nn.Linear default init: U(-1/sqrt(fan_in), 1/sqrt(fan_in)).
    bound = 1.0 / np.sqrt(C)
    params = {
        # Weights stored as (in_features, out_features) so the kernel does
        # x @ W without any in-kernel transpose.
        "w1": jax.random.uniform(kw1, (C, C), jnp.float32, -bound, bound),
        "b1": jax.random.uniform(kb1, (1, C), jnp.float32, -bound, bound),
        "w2": jax.random.uniform(kw2, (C, C), jnp.float32, -bound, bound),
        "b2": jax.random.uniform(kb2, (1, C), jnp.float32, -bound, bound),
        # Non-trivial BN affine params so the affine path is actually tested.
        "gamma1": 1.0 + 0.1 * jax.random.normal(kg1, (1, C), dtype=jnp.float32),
        "beta1": 0.1 * jax.random.normal(kbe1, (1, C), dtype=jnp.float32),
        "gamma2": 1.0 + 0.1 * jax.random.normal(kg2, (1, C), dtype=jnp.float32),
        "beta2": 0.1 * jax.random.normal(kbe2, (1, C), dtype=jnp.float32),
    }

    out = jax.jit(residual_block)(x, params)
    out = jax.block_until_ready(out)

    ref = jax.block_until_ready(residual_block_reference(x, params))

    np.testing.assert_allclose(np.asarray(out), np.asarray(ref),
                               rtol=2e-3, atol=2e-3)

    print("KERNEL_OK")
</pallas_src>

<mosaic_0001>
module attributes {stable_mosaic.version = 11 : i64} {
  func.func @_residual_block_kernel(%arg0: i32, %arg1: memref<8x128xf32, #tpu.memory_space<vmem>>, %arg2: memref<128x128xf32, #tpu.memory_space<vmem>>, %arg3: memref<1x128xf32, #tpu.memory_space<vmem>>, %arg4: memref<1x128xf32, #tpu.memory_space<vmem>>, %arg5: memref<1x128xf32, #tpu.memory_space<vmem>>, %arg6: memref<128x128xf32, #tpu.memory_space<vmem>>, %arg7: memref<1x128xf32, #tpu.memory_space<vmem>>, %arg8: memref<1x128xf32, #tpu.memory_space<vmem>>, %arg9: memref<1x128xf32, #tpu.memory_space<vmem>>, %arg10: memref<8x128xf32, #tpu.memory_space<vmem>>) attributes {dimension_semantics = [#tpu.dimension_semantics<arbitrary>], iteration_bounds = array<i64: 1>, scalar_prefetch = 0 : i64, scratch_operands = 0 : i64, tpu.core_type = #tpu.core_type<tc>, window_params = [{pipeline_mode = #tpu.pipeline_mode<synchronous>, transform_indices = @transform_0, window_bounds = array<i64: 8, 128>}, {pipeline_mode = #tpu.pipeline_mode<synchronous>, transform_indices = @transform_1, window_bounds = array<i64: 128, 128>}, {pipeline_mode = #tpu.pipeline_mode<synchronous>, transform_indices = @transform_2, window_bounds = array<i64: 1, 128>}, {pipeline_mode = #tpu.pipeline_mode<synchronous>, transform_indices = @transform_3, window_bounds = array<i64: 1, 128>}, {pipeline_mode = #tpu.pipeline_mode<synchronous>, transform_indices = @transform_4, window_bounds = array<i64: 1, 128>}, {pipeline_mode = #tpu.pipeline_mode<synchronous>, transform_indices = @transform_5, window_bounds = array<i64: 128, 128>}, {pipeline_mode = #tpu.pipeline_mode<synchronous>, transform_indices = @transform_6, window_bounds = array<i64: 1, 128>}, {pipeline_mode = #tpu.pipeline_mode<synchronous>, transform_indices = @transform_7, window_bounds = array<i64: 1, 128>}, {pipeline_mode = #tpu.pipeline_mode<synchronous>, transform_indices = @transform_8, window_bounds = array<i64: 1, 128>}, {pipeline_mode = #tpu.pipeline_mode<synchronous>, transform_indices = @transform_9, window_bounds = array<i64: 8, 128>}]} {
    %c0 = arith.constant 0 : index
    %c0_0 = arith.constant 0 : index
    %0 = vector.load %arg1[%c0, %c0_0] : memref<8x128xf32, #tpu.memory_space<vmem>>, vector<8x128xf32>
    %c0_1 = arith.constant 0 : index
    %c0_2 = arith.constant 0 : index
    %1 = vector.load %arg2[%c0_1, %c0_2] : memref<128x128xf32, #tpu.memory_space<vmem>>, vector<128x128xf32>
    %cst = arith.constant dense<0.000000e+00> : vector<8x128xf32>
    %2 = tpu.matmul %0, %1, %cst {dimension_numbers = #tpu.dot_dimension_numbers<[1], [0], [0], [1], [0, 0, 1, 1], [], []>} : vector<8x128xf32>, vector<128x128xf32>, vector<8x128xf32> -> vector<8x128xf32>
    %c0_3 = arith.constant 0 : index
    %c0_4 = arith.constant 0 : index
    %3 = vector.load %arg3[%c0_3, %c0_4] : memref<1x128xf32, #tpu.memory_space<vmem>>, vector<1x128xf32>
    %4 = vector.broadcast %3 : vector<1x128xf32> to vector<8x128xf32>
    %5 = arith.addf %2, %4 : vector<8x128xf32>
    %cst_5 = arith.constant dense<0.000000e+00> : vector<128xf32>
    %6 = vector.multi_reduction <add>, %5, %cst_5 [0] : vector<8x128xf32> to vector<128xf32>
    %7 = vector.shape_cast %6 : vector<128xf32> to vector<1x128xf32>
    %cst_6 = arith.constant 8.000000e+00 : f32
    %8 = vector.broadcast %cst_6 : f32 to vector<1x128xf32>
    %9 = arith.divf %7, %8 : vector<1x128xf32>
    %10 = vector.broadcast %9 : vector<1x128xf32> to vector<8x128xf32>
    %11 = arith.subf %5, %10 : vector<8x128xf32>
    %12 = arith.mulf %11, %11 : vector<8x128xf32>
    %cst_7 = arith.constant dense<0.000000e+00> : vector<128xf32>
    %13 = vector.multi_reduction <add>, %12, %cst_7 [0] : vector<8x128xf32> to vector<128xf32>
    %14 = vector.shape_cast %13 : vector<128xf32> to vector<1x128xf32>
    %cst_8 = arith.constant 8.000000e+00 : f32
    %15 = vector.broadcast %cst_8 : f32 to vector<1x128xf32>
    %16 = arith.divf %14, %15 : vector<1x128xf32>
    %c0_9 = arith.constant 0 : index
    %c0_10 = arith.constant 0 : index
    %17 = vector.load %arg4[%c0_9, %c0_10] : memref<1x128xf32, #tpu.memory_space<vmem>>, vector<1x128xf32>
    %18 = vector.broadcast %17 : vector<1x128xf32> to vector<8x128xf32>
    %19 = arith.mulf %18, %11 : vector<8x128xf32>
    %cst_11 = arith.constant 9.99999974E-6 : f32
    %20 = vector.broadcast %cst_11 : f32 to vector<1x128xf32>
    %21 = arith.addf %16, %20 : vector<1x128xf32>
    %22 = math.rsqrt %21 : vector<1x128xf32>
    %23 = vector.broadcast %22 : vector<1x128xf32> to vector<8x128xf32>
    %24 = arith.mulf %19, %23 : vector<8x128xf32>
    %c0_12 = arith.constant 0 : index
    %c0_13 = arith.constant 0 : index
    %25 = vector.load %arg5[%c0_12, %c0_13] : memref<1x128xf32, #tpu.memory_space<vmem>>, vector<1x128xf32>
    %26 = vector.broadcast %25 : vector<1x128xf32> to vector<8x128xf32>
    %27 = arith.addf %24, %26 : vector<8x128xf32>
    %cst_14 = arith.constant 0.000000e+00 : f32
    %28 = vector.broadcast %cst_14 : f32 to vector<8x128xf32>
    %29 = arith.maximumf %27, %28 : vector<8x128xf32>
    %c0_15 = arith.constant 0 : index
    %c0_16 = arith.constant 0 : index
    %30 = vector.load %arg6[%c0_15, %c0_16] : memref<128x128xf32, #tpu.memory_space<vmem>>, vector<128x128xf32>
    %cst_17 = arith.constant dense<0.000000e+00> : vector<8x128xf32>
    %31 = tpu.matmul %29, %30, %cst_17 {dimension_numbers = #tpu.dot_dimension_numbers<[1], [0], [0], [1], [0, 0, 1, 1], [], []>} : vector<8x128xf32>, vector<128x128xf32>, vector<8x128xf32> -> vector<8x128xf32>
    %c0_18 = arith.constant 0 : index
    %c0_19 = arith.constant 0 : index
    %32 = vector.load %arg7[%c0_18, %c0_19] : memref<1x128xf32, #tpu.memory_space<vmem>>, vector<1x128xf32>
    %33 = vector.broadcast %32 : vector<1x128xf32> to vector<8x128xf32>
    %34 = arith.addf %31, %33 : vector<8x128xf32>
    %cst_20 = arith.constant dense<0.000000e+00> : vector<128xf32>
    %35 = vector.multi_reduction <add>, %34, %cst_20 [0] : vector<8x128xf32> to vector<128xf32>
    %36 = vector.shape_cast %35 : vector<128xf32> to vector<1x128xf32>
    %cst_21 = arith.constant 8.000000e+00 : f32
    %37 = vector.broadcast %cst_21 : f32 to vector<1x128xf32>
    %38 = arith.divf %36, %37 : vector<1x128xf32>
    %39 = vector.broadcast %38 : vector<1x128xf32> to vector<8x128xf32>
    %40 = arith.subf %34, %39 : vector<8x128xf32>
    %41 = arith.mulf %40, %40 : vector<8x128xf32>
    %cst_22 = arith.constant dense<0.000000e+00> : vector<128xf32>
    %42 = vector.multi_reduction <add>, %41, %cst_22 [0] : vector<8x128xf32> to vector<128xf32>
    %43 = vector.shape_cast %42 : vector<128xf32> to vector<1x128xf32>
    %cst_23 = arith.constant 8.000000e+00 : f32
    %44 = vector.broadcast %cst_23 : f32 to vector<1x128xf32>
    %45 = arith.divf %43, %44 : vector<1x128xf32>
    %c0_24 = arith.constant 0 : index
    %c0_25 = arith.constant 0 : index
    %46 = vector.load %arg8[%c0_24, %c0_25] : memref<1x128xf32, #tpu.memory_space<vmem>>, vector<1x128xf32>
    %47 = vector.broadcast %46 : vector<1x128xf32> to vector<8x128xf32>
    %48 = arith.mulf %47, %40 : vector<8x128xf32>
    %cst_26 = arith.constant 9.99999974E-6 : f32
    %49 = vector.broadcast %cst_26 : f32 to vector<1x128xf32>
    %50 = arith.addf %45, %49 : vector<1x128xf32>
    %51 = math.rsqrt %50 : vector<1x128xf32>
    %52 = vector.broadcast %51 : vector<1x128xf32> to vector<8x128xf32>
    %53 = arith.mulf %48, %52 : vector<8x128xf32>
    %c0_27 = arith.constant 0 : index
    %c0_28 = arith.constant 0 : index
    %54 = vector.load %arg9[%c0_27, %c0_28] : memref<1x128xf32, #tpu.memory_space<vmem>>, vector<1x128xf32>
    %55 = vector.broadcast %54 : vector<1x128xf32> to vector<8x128xf32>
    %56 = arith.addf %53, %55 : vector<8x128xf32>
    %57 = arith.addf %56, %0 : vector<8x128xf32>
    %cst_29 = arith.constant 0.000000e+00 : f32
    %58 = vector.broadcast %cst_29 : f32 to vector<8x128xf32>
    %59 = arith.maximumf %57, %58 : vector<8x128xf32>
    %c0_30 = arith.constant 0 : index
    %c0_31 = arith.constant 0 : index
    %60 = vector.load %arg10[%c0_30, %c0_31] : memref<8x128xf32, #tpu.memory_space<vmem>>, vector<8x128xf32>
    tpu.vector_store %arg10[%c0_30, %c0_31], %59 {strides = array<i32>} : memref<8x128xf32, #tpu.memory_space<vmem>>, vector<8x128xf32>,
    return
  }
  func.func @transform_0(%arg0: i32) -> (i32, i32) {
    %c0_i32 = arith.constant 0 : i32
    %c0_i32_0 = arith.constant 0 : i32
    %c0_i32_1 = arith.constant 0 : i32
    return %c0_i32, %c0_i32_0 : i32, i32
  }
  func.func @transform_1(%arg0: i32) -> (i32, i32) {
    %c0_i32 = arith.constant 0 : i32
    %c0_i32_0 = arith.constant 0 : i32
    %c0_i32_1 = arith.constant 0 : i32
    return %c0_i32, %c0_i32_0 : i32, i32
  }
  func.func @transform_2(%arg0: i32) -> (i32, i32) {
    %c0_i32 = arith.constant 0 : i32
    %c0_i32_0 = arith.constant 0 : i32
    %c0_i32_1 = arith.constant 0 : i32
    return %c0_i32, %c0_i32_0 : i32, i32
  }
  func.func @transform_3(%arg0: i32) -> (i32, i32) {
    %c0_i32 = arith.constant 0 : i32
    %c0_i32_0 = arith.constant 0 : i32
    %c0_i32_1 = arith.constant 0 : i32
    return %c0_i32, %c0_i32_0 : i32, i32
  }
  func.func @transform_4(%arg0: i32) -> (i32, i32) {
    %c0_i32 = arith.constant 0 : i32
    %c0_i32_0 = arith.constant 0 : i32
    %c0_i32_1 = arith.constant 0 : i32
    return %c0_i32, %c0_i32_0 : i32, i32
  }
  func.func @transform_5(%arg0: i32) -> (i32, i32) {
    %c0_i32 = arith.constant 0 : i32
    %c0_i32_0 = arith.constant 0 : i32
    %c0_i32_1 = arith.constant 0 : i32
    return %c0_i32, %c0_i32_0 : i32, i32
  }
  func.func @transform_6(%arg0: i32) -> (i32, i32) {
    %c0_i32 = arith.constant 0 : i32
    %c0_i32_0 = arith.constant 0 : i32
    %c0_i32_1 = arith.constant 0 : i32
    return %c0_i32, %c0_i32_0 : i32, i32
  }
  func.func @transform_7(%arg0: i32) -> (i32, i32) {
    %c0_i32 = arith.constant 0 : i32
    %c0_i32_0 = arith.constant 0 : i32
    %c0_i32_1 = arith.constant 0 : i32
    return %c0_i32, %c0_i32_0 : i32, i32
  }
  func.func @transform_8(%arg0: i32) -> (i32, i32) {
    %c0_i32 = arith.constant 0 : i32
    %c0_i32_0 = arith.constant 0 : i32
    %c0_i32_1 = arith.constant 0 : i32
    return %c0_i32, %c0_i32_0 : i32, i32
  }
  func.func @transform_9(%arg0: i32) -> (i32, i32) {
    %c0_i32 = arith.constant 0 : i32
    %c0_i32_0 = arith.constant 0 : i32
    %c0_i32_1 = arith.constant 0 : i32
    return %c0_i32, %c0_i32_0 : i32, i32
  }
}

</mosaic_0001>

<llo_original>
// kernel: residual_block.1
$region0: #{residual_block.1}
  #allocation0 [shape = 'u32[]', space=smem, size = 0x4, offset = 0x4, fixed_abs, tag = 'smem constant byte address 0x4 - core index']
  #allocation1 [shape = 'u32[72,128]{1,0:T(1,128)}', space=vmem, size = 0x9000, scoped, tag = 'internal scratch']
  %s0 = inlined_call_operand.hbm [shape: f32[8,128], index: 0, kind: input, shape index: {}]
  %s1 = inlined_call_operand.hbm [shape: f32[128,128], index: 1, kind: input, shape index: {}]
  %s2 = inlined_call_operand.hbm [shape: f32[1,128], index: 2, kind: input, shape index: {}]
  %s3 = inlined_call_operand.vmem [shape: f32[1,128], index: 3, kind: input, shape index: {}]
  %s4 = inlined_call_operand.vmem [shape: f32[1,128], index: 4, kind: input, shape index: {}]
  %s5 = inlined_call_operand.hbm [shape: f32[128,128], index: 5, kind: input, shape index: {}]
  %s6 = inlined_call_operand.hbm [shape: f32[1,128], index: 6, kind: input, shape index: {}]
  %s7 = inlined_call_operand.vmem [shape: f32[1,128], index: 7, kind: input, shape index: {}]
  %s8 = inlined_call_operand.hbm [shape: f32[1,128], index: 8, kind: input, shape index: {}]
  %s9 = inlined_call_operand.hbm [shape: f32[8,128], index: 9, kind: output, shape index: {}]
  %s10 = sld [smem:[#allocation0]]
  $region70: #{residual_block.1} parent=0
    _
  %s12 = ssub.s32 1, %s10
  %s13 = scalar_select 0, %s12, %s10
  $region1: #{residual_block.1} parent=0
    #allocation2 [shape = 'u8[4096]{0}', space=vmem, size = 0x1000, scoped, tag = 'input window, operand 0, single buffered']
    #allocation3 [shape = 's32[1]{0}', space=sflag, size = 0x4, scoped, tag = 'scoped memory for residual_block.1']
    #allocation4 [shape = 's32[1]{0}', space=sflag, size = 0x4, scoped, tag = 'scoped memory for residual_block.1']
    #allocation5 [shape = 'u8[65536]{0}', space=vmem, size = 0x10000, scoped, tag = 'input window, operand 1, single buffered']
    #allocation6 [shape = 's32[1]{0}', space=sflag, size = 0x4, scoped, tag = 'scoped memory for residual_block.1']
    #allocation7 [shape = 'u8[512]{0}', space=vmem, size = 0x400, scoped, tag = 'input window, operand 2, single buffered']
    #allocation8 [shape = 'u8[65536]{0}', space=vmem, size = 0x10000, scoped, tag = 'input window, operand 5, single buffered']
    #allocation9 [shape = 's32[1]{0}', space=sflag, size = 0x4, scoped, tag = 'scoped memory for residual_block.1']
    #allocation10 [shape = 'u8[512]{0}', space=vmem, size = 0x400, scoped, tag = 'input window, operand 6, single buffered']
    #allocation11 [shape = 'u8[512]{0}', space=vmem, size = 0x400, scoped, tag = 'input window, operand 8, single buffered']
    #allocation12 [shape = 's32[1]{0}', space=sflag, size = 0x4, scoped, tag = 'scoped memory for residual_block.1']
    #allocation13 [shape = 'u8[4096]{0}', space=vmem, size = 0x1000, scoped, tag = 'output window, operand 0, single buffered']
    %14 = vsyncpa [#allocation3], 0
    %15 = vsyncpa [#allocation6], 0
    %16 = vsyncpa [#allocation9], 0
    %17 = vsyncpa [#allocation12], 0
    %18 = vsyncpa [#allocation4], 0
    // Predicated region
    $region2: #{residual_block.1} parent=1 // pred_check
      _
    $region3: #{residual_block.1} parent=1 // pred_check_branch
      %20 = sbr.rel (0) target = $region5
    $region4: #{residual_block.1} parent=1 // pred_region
      %22 = vsyncadd [#allocation3], 0
      %s24 = sshll.u32 %s0, 4
      %s25 = int_to_ptr.hbm [resolvable:$true] %s24
      %s26 = sshll.u32 [#allocation2], 4
      %s27 = int_to_ptr.vmem [resolvable:$true] %s26
      %29 = dma.hbm_to_vmem [thread:$0]  %s25, 128, %s27, [#allocation3]
    $region5: #{residual_block.1} parent=1 // pred_fallthru
      _
    // Predicated region
    $region6: #{residual_block.1} parent=1 // pred_check
      _
    $region7: #{residual_block.1} parent=1 // pred_check_branch
      %31 = sbr.rel (0) target = $region9
    $region8: #{residual_block.1} parent=1 // pred_region
      %33 = vsyncadd [#allocation6], 0
      %s34 = sshll.u32 %s1, 4
      %s35 = int_to_ptr.hbm [resolvable:$true] %s34
      %s36 = sshll.u32 [#allocation5], 4
      %s37 = int_to_ptr.vmem [resolvable:$true] %s36
      %42 = dma.hbm_to_vmem [thread:$0]  %s35, 2048, %s37, [#allocation6], 128, 128, 8
    $region9: #{residual_block.1} parent=1 // pred_fallthru
      _
    // Predicated region
    $region10: #{residual_block.1} parent=1 // pred_check
      _
    $region11: #{residual_block.1} parent=1 // pred_check_branch
      %44 = sbr.rel (0) target = $region13
    $region12: #{residual_block.1} parent=1 // pred_region
      %46 = vsyncadd [#allocation6], 0
      %s48 = sshll.u32 %s2, 4
      %s49 = int_to_ptr.hbm [resolvable:$true] %s48
      %s50 = sshll.u32 [#allocation7], 4
      %s51 = int_to_ptr.vmem [resolvable:$true] %s50
      %53 = dma.hbm_to_vmem [thread:$0]  %s49, 16, %s51, [#allocation6]
    $region13: #{residual_block.1} parent=1 // pred_fallthru
      _
    // Predicated region
    $region14: #{residual_block.1} parent=1 // pred_check
      _
    $region15: #{residual_block.1} parent=1 // pred_check_branch
      %55 = sbr.rel (0) target = $region17
    $region16: #{residual_block.1} parent=1 // pred_region
      _
    $region17: #{residual_block.1} parent=1 // pred_fallthru
      _
    // Predicated region
    $region18: #{residual_block.1} parent=1 // pred_check
      _
    $region19: #{residual_block.1} parent=1 // pred_check_branch
      %57 = sbr.rel (0) target = $region21
    $region20: #{residual_block.1} parent=1 // pred_region
      _
    $region21: #{residual_block.1} parent=1 // pred_fallthru
      _
    // Predicated region
    $region22: #{residual_block.1} parent=1 // pred_check
      _
    $region23: #{residual_block.1} parent=1 // pred_check_branch
      %59 = sbr.rel (0) target = $region25
    $region24: #{residual_block.1} parent=1 // pred_region
      %61 = vsyncadd [#allocation9], 0
      %s62 = sshll.u32 %s5, 4
      %s63 = int_to_ptr.hbm [resolvable:$true] %s62
      %s64 = sshll.u32 [#allocation8], 4
      %s65 = int_to_ptr.vmem [resolvable:$true] %s64
      %70 = dma.hbm_to_vmem [thread:$0]  %s63, 2048, %s65, [#allocation9], 128, 128, 8
    $region25: #{residual_block.1} parent=1 // pred_fallthru
      _
    // Predicated region
    $region26: #{residual_block.1} parent=1 // pred_check
      _
    $region27: #{residual_block.1} parent=1 // pred_check_branch
      %72 = sbr.rel (0) target = $region29
    $region28: #{residual_block.1} parent=1 // pred_region
      %74 = vsyncadd [#allocation9], 0
      %s76 = sshll.u32 %s6, 4
      %s77 = int_to_ptr.hbm [resolvable:$true] %s76
      %s78 = sshll.u32 [#allocation10], 4
      %s79 = int_to_ptr.vmem [resolvable:$true] %s78
      %81 = dma.hbm_to_vmem [thread:$0]  %s77, 16, %s79, [#allocation9]
    $region29: #{residual_block.1} parent=1 // pred_fallthru
      _
    // Predicated region
    $region30: #{residual_block.1} parent=1 // pred_check
      _
    $region31: #{residual_block.1} parent=1 // pred_check_branch
      %83 = sbr.rel (0) target = $region33
    $region32: #{residual_block.1} parent=1 // pred_region
      _
    $region33: #{residual_block.1} parent=1 // pred_fallthru
      _
    // Predicated region
    $region34: #{residual_block.1} parent=1 // pred_check
      _
    $region35: #{residual_block.1} parent=1 // pred_check_branch
      %85 = sbr.rel (0) target = $region37
    $region36: #{residual_block.1} parent=1 // pred_region
      %87 = vsyncadd [#allocation12], 0
      %s89 = sshll.u32 %s8, 4
      %s90 = int_to_ptr.hbm [resolvable:$true] %s89
      %s91 = sshll.u32 [#allocation11], 4
      %s92 = int_to_ptr.vmem [resolvable:$true] %s91
      %94 = dma.hbm_to_vmem [thread:$0]  %s90, 16, %s92, [#allocation12]
    $region37: #{residual_block.1} parent=1 // pred_fallthru
      _
    // Predicated region
    $region38: #{residual_block.1} parent=1 // pred_check
      _
    $region39: #{residual_block.1} parent=1 // pred_check_branch
      %96 = sbr.rel (0) target = $region41
    $region40: #{residual_block.1} parent=1 // pred_region
      %98 = dma.done [#allocation3], 128
    $region41: #{residual_block.1} parent=1 // pred_fallthru
      _
    // Predicated region
    $region42: #{residual_block.1} parent=1 // pred_check
      _
    $region43: #{residual_block.1} parent=1 // pred_check_branch
      %100 = sbr.rel (0) target = $region45
    $region44: #{residual_block.1} parent=1 // pred_region
      %102 = dma.done [#allocation6], 2048
    $region45: #{residual_block.1} parent=1 // pred_fallthru
      _
    // Predicated region
    $region46: #{residual_block.1} parent=1 // pred_check
      _
    $region47: #{residual_block.1} parent=1 // pred_check_branch
      %104 = sbr.rel (0) target = $region49
    $region48: #{residual_block.1} parent=1 // pred_region
      %106 = dma.done [#allocation6], 16
    $region49: #{residual_block.1} parent=1 // pred_fallthru
      _
    // Predicated region
    $region50: #{residual_block.1} parent=1 // pred_check
      _
    $region51: #{residual_block.1} parent=1 // pred_check_branch
      %108 = sbr.rel (0) target = $region53
    $region52: #{residual_block.1} parent=1 // pred_region
      %110 = dma.done [#allocation9], 2048
    $region53: #{residual_block.1} parent=1 // pred_fallthru
      _
    // Predicated region
    $region54: #{residual_block.1} parent=1 // pred_check
      _
    $region55: #{residual_block.1} parent=1 // pred_check_branch
      %112 = sbr.rel (0) target = $region57
    $region56: #{residual_block.1} parent=1 // pred_region
      %114 = dma.done [#allocation9], 16
    $region57: #{residual_block.1} parent=1 // pred_fallthru
      _
    // Predicated region
    $region58: #{residual_block.1} parent=1 // pred_check
      _
    $region59: #{residual_block.1} parent=1 // pred_check_branch
      %116 = sbr.rel (0) target = $region61
    $region60: #{residual_block.1} parent=1 // pred_region
      %118 = dma.done [#allocation12], 16
    $region61: #{residual_block.1} parent=1 // pred_fallthru
      _
    %v119 = vld [vmem:[#allocation2] sm:$0xff]
    %v120 = vld [vmem:[#allocation5] sm:$0xff]
    %v121 = vld [vmem:[#allocation5 + $0x8] sm:$0xff]
    %v122 = vld [vmem:[#allocation5 + $0x10] sm:$0xff]
    %v123 = vld [vmem:[#allocation5 + $0x18] sm:$0xff]
    %v124 = vld [vmem:[#allocation5 + $0x20] sm:$0xff]
    %v125 = vld [vmem:[#allocation5 + $0x28] sm:$0xff]
    %v126 = vld [vmem:[#allocation5 + $0x30] sm:$0xff]
    %v127 = vld [vmem:[#allocation5 + $0x38] sm:$0xff]
    %v128 = vld [vmem:[#allocation5 + $0x40] sm:$0xff]
    %v129 = vld [vmem:[#allocation5 + $0x48] sm:$0xff]
    %v130 = vld [vmem:[#allocation5 + $0x50] sm:$0xff]
    %v131 = vld [vmem:[#allocation5 + $0x58] sm:$0xff]
    %v132 = vld [vmem:[#allocation5 + $0x60] sm:$0xff]
    %v133 = vld [vmem:[#allocation5 + $0x68] sm:$0xff]
    %v134 = vld [vmem:[#allocation5 + $0x70] sm:$0xff]
    %v135 = vld [vmem:[#allocation5 + $0x78] sm:$0xff]
    %v136 = vld [vmem:[#allocation7] sm:$0x1]
    %v138 = vperm.slane %v136, 0
    %140 = vmatpush.msra.mxu0 %v135
    %141 = vmatpush.msra.mxu0 %v134
    %142 = vmatpush.msra.mxu0 %v133
    %143 = vmatpush.msra.mxu0 %v132
    %144 = vmatpush.msra.mxu0 %v131
    %145 = vmatpush.msra.mxu0 %v130
    %146 = vmatpush.msra.mxu0 %v129
    %147 = vmatpush.msra.mxu0 %v128
    %148 = vmatpush.msra.mxu0 %v127
    %149 = vmatpush.msra.mxu0 %v126
    %150 = vmatpush.msra.mxu0 %v125
    %151 = vmatpush.msra.mxu0 %v124
    %152 = vmatpush.msra.mxu0 %v123
    %153 = vmatpush.msra.mxu0 %v122
    %154 = vmatpush.msra.mxu0 %v121
    %155 = vmatpush.msra.mxu0 %v120
    %156 = vmatmul.f32.gmra.mxu0 %v119
    %v157 = vpop.f32.mrf.mxu0
    %v158 = vadd.f32 %v138, %v157
    %159 = vdwg.mxu0
    %v160 = vrot.slane %v158, 4
    %v161 = vadd.f32 %v158, %v160
    %v162 = vrot.slane %v161, 2
    %v163 = vadd.f32 %v161, %v162
    %v164 = vrot.slane %v163, 1
    %v165 = vadd.f32 %v163, %v164
    %v166 = vrcp.pop 8.0
    %v167 = vmul.f32 8.0, %v166
    %v168 = vsub.f32 1.0, %v167
    %v169 = vmul.f32 %v166, %v168
    %v170 = vadd.f32 %v166, %v169
    %vm171 = vweird.f32 %v166
    %v172 = vsel %vm171, %v166, %v170
    %v173 = vmul.f32 %v165, %v172
    %v174 = vsub.f32 %v158, %v173
    %v175 = vmul.f32 %v174, %v174
    %v176 = vrot.slane %v175, 4
    %v177 = vadd.f32 %v175, %v176
    %v178 = vrot.slane %v177, 2
    %v179 = vadd.f32 %v177, %v178
    %v180 = vrot.slane %v179, 1
    %v181 = vadd.f32 %v179, %v180
    %v182 = vmul.f32 %v181, %v172
    %v183 = vld [vmem:[%s3] sm:$0x1]
    %v185 = vperm.slane %v183, 0
    %v187 = vmul.f32 %v185, %v174
    %v188 = vadd.f32 %v182, 1e-05
    %v189 = vrsqrt.pop %v188
    %v190 = vmul.f32 %v189, %v188
    %v191 = vmul.f32 %v190, %v189
    %v192 = vmul.f32 0.5, %v191
    %v193 = vsub.f32 1.5, %v192
    %v194 = vmul.f32 %v189, %v193
    %vm195 = vweird.f32 %v188
    %vm196 = vweird.f32 %v189
    %vm197 = vmor %vm195, %vm196
    %v198 = vsel %vm197, %v189, %v194
    %v199 = vmul.f32 %v187, %v198
    %v200 = vld [vmem:[%s4] sm:$0x1]
    %v202 = vperm.slane %v200, 0
    %v204 = vadd.f32 %v199, %v202
    %v205 = vmax.f32 %v204, 0.0
    %v206 = vld [vmem:[#allocation8] sm:$0xff]
    %v207 = vld [vmem:[#allocation8 + $0x8] sm:$0xff]
    %v208 = vld [vmem:[#allocation8 + $0x10] sm:$0xff]
    %v209 = vld [vmem:[#allocation8 + $0x18] sm:$0xff]
    %v210 = vld [vmem:[#allocation8 + $0x20] sm:$0xff]
    %v211 = vld [vmem:[#allocation8 + $0x28] sm:$0xff]
    %v212 = vld [vmem:[#allocation8 + $0x30] sm:$0xff]
    %v213 = vld [vmem:[#allocation8 + $0x38] sm:$0xff]
    %v214 = vld [vmem:[#allocation8 + $0x40] sm:$0xff]
    %v215 = vld [vmem:[#allocation8 + $0x48] sm:$0xff]
    %v216 = vld [vmem:[#allocation8 + $0x50] sm:$0xff]
    %v217 = vld [vmem:[#allocation8 + $0x58] sm:$0xff]
    %v218 = vld [vmem:[#allocation8 + $0x60] sm:$0xff]
    %v219 = vld [vmem:[#allocation8 + $0x68] sm:$0xff]
    %v220 = vld [vmem:[#allocation8 + $0x70] sm:$0xff]
    %v221 = vld [vmem:[#allocation8 + $0x78] sm:$0xff]
    %v222 = vld [vmem:[#allocation10] sm:$0x1]
    %v224 = vperm.slane %v222, 0
    %226 = vmatpush.msra.mxu0 %v221
    %227 = vmatpush.msra.mxu0 %v220
    %228 = vmatpush.msra.mxu0 %v219
    %229 = vmatpush.msra.mxu0 %v218
    %230 = vmatpush.msra.mxu0 %v217
    %231 = vmatpush.msra.mxu0 %v216
    %232 = vmatpush.msra.mxu0 %v215
    %233 = vmatpush.msra.mxu0 %v214
    %234 = vmatpush.msra.mxu0 %v213
    %235 = vmatpush.msra.mxu0 %v212
    %236 = vmatpush.msra.mxu0 %v211
    %237 = vmatpush.msra.mxu0 %v210
    %238 = vmatpush.msra.mxu0 %v209
    %239 = vmatpush.msra.mxu0 %v208
    %240 = vmatpush.msra.mxu0 %v207
    %241 = vmatpush.msra.mxu0 %v206
    %242 = vmatmul.f32.gmra.mxu0 %v205
    %v243 = vpop.f32.mrf.mxu0
    %v244 = vadd.f32 %v224, %v243
    %245 = vdwg.mxu0
    %v246 = vrot.slane %v244, 4
    %v247 = vadd.f32 %v244, %v246
    %v248 = vrot.slane %v247, 2
    %v249 = vadd.f32 %v247, %v248
    %v250 = vrot.slane %v249, 1
    %v251 = vadd.f32 %v249, %v250
    %v252 = vmul.f32 %v251, %v172
    %v253 = vsub.f32 %v244, %v252
    %v254 = vmul.f32 %v253, %v253
    %v255 = vrot.slane %v254, 4
    %v256 = vadd.f32 %v254, %v255
    %v257 = vrot.slane %v256, 2
    %v258 = vadd.f32 %v256, %v257
    %v259 = vrot.slane %v258, 1
    %v260 = vadd.f32 %v258, %v259
    %v261 = vmul.f32 %v260, %v172
    %v262 = vld [vmem:[%s7] sm:$0x1]
    %v264 = vperm.slane %v262, 0
    %v266 = vmul.f32 %v264, %v253
    %v267 = vadd.f32 %v261, 1e-05
    %v268 = vrsqrt.pop %v267
    %v269 = vmul.f32 %v268, %v267
    %v270 = vmul.f32 %v269, %v268
    %v271 = vmul.f32 0.5, %v270
    %v272 = vsub.f32 1.5, %v271
    %v273 = vmul.f32 %v268, %v272
    %vm274 = vweird.f32 %v267
    %vm275 = vweird.f32 %v268
    %vm276 = vmor %vm274, %vm275
    %v277 = vsel %vm276, %v268, %v273
    %v278 = vmul.f32 %v266, %v277
    %v279 = vld [vmem:[#allocation11] sm:$0x1]
    %v281 = vperm.slane %v279, 0
    %v283 = vadd.f32 %v278, %v281
    %v284 = vadd.f32 %v283, %v119
    %v285 = vmax.f32 %v284, 0.0
    %286 = vst [vmem:[#allocation13] sm:$0xff] %v285
    // Predicated region
    $region62: #{residual_block.1} parent=1 // pred_check
      _
    $region63: #{residual_block.1} parent=1 // pred_check_branch
      %288 = sbr.rel (0) target = $region65
    $region64: #{residual_block.1} parent=1 // pred_region
      %290 = vsyncadd [#allocation4], 0
      %s292 = sshll.u32 [#allocation13], 4
      %s293 = int_to_ptr.vmem [resolvable:$true] %s292
      %s294 = sshll.u32 %s9, 4
      %s295 = int_to_ptr.hbm [resolvable:$true] %s294
      %297 = dma.vmem_to_hbm [thread:$0]  %s293, 128, %s295, [#allocation4]
    $region65: #{residual_block.1} parent=1 // pred_fallthru
      _
    // Predicated region
    $region66: #{residual_block.1} parent=1 // pred_check
      _
    $region67: #{residual_block.1} parent=1 // pred_check_branch
      %299 = sbr.rel (0) target = $region69
    $region68: #{residual_block.1} parent=1 // pred_region
      %301 = dma.done [#allocation4], 128
    $region69: #{residual_block.1} parent=1 // pred_fallthru
      _
    %302 = vsyncpa [#allocation3], 1
    %303 = vsyncpa [#allocation6], 1
    %304 = vsyncpa [#allocation9], 1
    %305 = vsyncpa [#allocation12], 1
    %306 = vsyncpa [#allocation4], 1

</llo_original>
